<compile_context>
chip_gen: v6e
topology: v6e:2x2x1
jax: 0.10.0
libtpu: 0.0.40
codegen_flags: <defaults>
</compile_context>

<pallas_src>
import jax
import jax.numpy as jnp
from jax.experimental import pallas as pl
from jax.experimental.pallas import tpu as pltpu

_SQRT_2_OVER_PI = 0.7978845608028654


def _gelu_tanh(x):
    # activation = nn.GELU(approximate='tanh'); computed in f32 (v5e has no bf16 VPU/EUP).
    x3 = x * x * x
    return 0.5 * x * (1.0 + jnp.tanh(jnp.float32(_SQRT_2_OVER_PI) * (x + 0.044715 * x3)))


def _round_up(a, b):
    return (a + b - 1) // b * b


def _conv_stats_kernel(x_ref, w_ref, y_ref, stats_ref):
    """Fused GELU -> conv-as-one-matmul -> per-tile BN partial statistics.

    x_ref    : (tile_m, KCp)  bf16 im2col'd input rows (zero-padded rows/cols)
    w_ref    : (KCp, Fp)      bf16 conv weight reshaped to (K*C, F), zero-padded
    y_ref    : (tile_m, Fp)   f32 conv output tile
    stats_ref: (1, 2, Fp)     f32 per-tile [sum; sum of squares] over the tile rows
    """
    # GELU in f32, down-cast only the matmul operand (GELU(0)=0, so padded rows stay zero).
    xa = _gelu_tanh(x_ref[...].astype(jnp.float32)).astype(jnp.bfloat16)
    # Single MXU matmul with contraction over K*C, f32 accumulation.
    acc = jnp.dot(xa, w_ref[...], preferred_element_type=jnp.float32)
    y_ref[...] = acc
    # BN partial statistics (padded rows are exactly zero -> contribute nothing).
    stats_ref[0, 0:1, :] = jnp.sum(acc, axis=0, keepdims=True)
    stats_ref[0, 1:2, :] = jnp.sum(acc * acc, axis=0, keepdims=True)


def _bn_apply_kernel(y_ref, scale_ref, shift_ref, o_ref):
    """y = conv*scale + shift with per-channel scale/shift (train-mode BN folded)."""
    o_ref[...] = (y_ref[...] * scale_ref[...] + shift_ref[...]).astype(o_ref.dtype)


def conv_block_forward(x_ncl, w_fck, gamma, beta, *, kernel_size, eps=1e-5, tile_m=512):
    """x_ncl: (N, C, L) PyTorch layout. w_fck: (F, C, K) PyTorch Conv1d weight (bias=False)."""
    N, C, L = x_ncl.shape
    F_, C2, K = w_fck.shape
    assert C == C2 and K == kernel_size

    # ---- wrapper-side im2col ('same' padding, k-major / c-minor feature order) ----
    pad_l = (K - 1) // 2
    pad_r = (K - 1) - pad_l
    x_nlc = jnp.transpose(x_ncl, (0, 2, 1)).astype(jnp.float32)          # NCL -> NLC
    xp = jnp.pad(x_nlc, ((0, 0), (pad_l, pad_r), (0, 0)))                # (N, L+K-1, C)
    cols = jnp.stack([xp[:, k:k + L, :] for k in range(K)], axis=2)      # (N, L, K, C)
    x_i2c = cols.reshape(N * L, K * C)

    # conv weight (F, C, K) -> (K*C, F) matching the im2col feature ordering.
    w2 = jnp.transpose(w_fck, (2, 1, 0)).reshape(K * C, F_).astype(jnp.float32)

    # ---- pad to lane-dense, tile-aligned shapes ----
    M, KC = N * L, K * C
    if M < tile_m:                                   # small problems: one tile
        tile_m = max(8, _round_up(M, 8))
    # NOTE(v7x): with 64 MiB VMEM, prefer tile_m=256 at large K*C / F.
    Mp = _round_up(M, tile_m)
    KCp = _round_up(KC, 128)
    Fp = _round_up(F_, 128)
    n_tiles = Mp // tile_m

    x_pad = jnp.zeros((Mp, KCp), jnp.bfloat16).at[:M, :KC].set(x_i2c.astype(jnp.bfloat16))
    w_pad = jnp.zeros((KCp, Fp), jnp.bfloat16).at[:KC, :F_].set(w2.astype(jnp.bfloat16))
    g_pad = jnp.zeros((Fp,), jnp.float32).at[:F_].set(gamma.astype(jnp.float32))
    b_pad = jnp.zeros((Fp,), jnp.float32).at[:F_].set(beta.astype(jnp.float32))

    # ---- pass 1: GELU + conv (one matmul per tile) + per-tile BN partial stats ----
    conv_out, stats = pl.pallas_call(
        _conv_stats_kernel,
        grid=(n_tiles,),
        in_specs=[
            pl.BlockSpec((tile_m, KCp), lambda i: (i, 0)),
            pl.BlockSpec((KCp, Fp), lambda i: (0, 0)),
        ],
        out_specs=(
            pl.BlockSpec((tile_m, Fp), lambda i: (i, 0)),
            pl.BlockSpec((1, 2, Fp), lambda i: (i, 0, 0)),
        ),
        out_shape=(
            jax.ShapeDtypeStruct((Mp, Fp), jnp.float32),
            jax.ShapeDtypeStruct((n_tiles, 2, Fp), jnp.float32),
        ),
        compiler_params=pltpu.CompilerParams(dimension_semantics=("parallel",)),
    )(x_pad, w_pad)

    # ---- combine BN statistics across tiles (O(F) work; correct global batch stats) ----
    cnt = jnp.float32(N * L)                      # padded rows contribute exactly zero
    ch_sum = jnp.sum(stats[:, 0, :], axis=0)      # (Fp,)
    ch_ssq = jnp.sum(stats[:, 1, :], axis=0)      # (Fp,)
    mean = ch_sum / cnt
    var = jnp.maximum(ch_ssq / cnt - mean * mean, 0.0)   # biased variance (training-mode BN)
    scale = (g_pad * jax.lax.rsqrt(var + jnp.float32(eps))).reshape(1, Fp)
    shift = (b_pad - mean * scale[0]).reshape(1, Fp)

    # ---- pass 2: normalize (lane-dense unmasked stores, parallel grid) ----
    out = pl.pallas_call(
        _bn_apply_kernel,
        grid=(n_tiles,),
        in_specs=[
            pl.BlockSpec((tile_m, Fp), lambda i: (i, 0)),
            pl.BlockSpec((1, Fp), lambda i: (0, 0)),
            pl.BlockSpec((1, Fp), lambda i: (0, 0)),
        ],
        out_specs=pl.BlockSpec((tile_m, Fp), lambda i: (i, 0)),
        out_shape=jax.ShapeDtypeStruct((Mp, Fp), x_ncl.dtype),
        compiler_params=pltpu.CompilerParams(dimension_semantics=("parallel",)),
    )(conv_out, scale, shift)

    # Slice away padding, back to PyTorch NCL layout (drop this transpose if downstream is NLC).
    out_nlf = out[:M, :F_].reshape(N, L, F_)
    return jnp.transpose(out_nlf, (0, 2, 1))


def _reference(x_ncl, w_fck, gamma, beta, eps=1e-5):
    """Pure-JAX f32 reference of the ConvBlock forward (GELU -> Conv1d 'same' -> BN train)."""
    K = w_fck.shape[2]
    pad_l = (K - 1) // 2
    pad_r = (K - 1) - pad_l
    xa = _gelu_tanh(x_ncl.astype(jnp.float32))
    y = jax.lax.conv_general_dilated(
        xa, w_fck.astype(jnp.float32), window_strides=(1,),
        padding=[(pad_l, pad_r)], dimension_numbers=("NCH", "OIH", "NCH"))
    mean = jnp.mean(y, axis=(0, 2), keepdims=True)
    var = jnp.mean((y - mean) ** 2, axis=(0, 2), keepdims=True)   # biased
    yn = (y - mean) * jax.lax.rsqrt(var + jnp.float32(eps))
    return yn * gamma[None, :, None] + beta[None, :, None]


if __name__ == "__main__":
    key = jax.random.PRNGKey(0)
    kx, kw = jax.random.split(key)

    N, C, L = 2, 4, 16          # batch, ch_dim, x_dim
    F_, K = 8, 5                # n_filters, kernel_size

    x = jax.random.normal(kx, (N, C, L), jnp.float32)
    # conv weight: kaiming_normal_(mode='fan_out') -> std = sqrt(2 / (F * K))
    w = jax.random.normal(kw, (F_, C, K), jnp.float32) * jnp.sqrt(2.0 / (F_ * K))
    # BatchNorm1d params: residual=False -> weight=1; bias=0 (PyTorch default)
    gamma = jnp.ones((F_,), jnp.float32)
    beta = jnp.zeros((F_,), jnp.float32)

    out = conv_block_forward(x, w, gamma, beta, kernel_size=K)
    out = jax.block_until_ready(out)
    assert out.shape == (N, F_, L)

    ref = _reference(x, w, gamma, beta)
    max_err = float(jnp.max(jnp.abs(out - ref)))
    assert jnp.allclose(out, ref, atol=7e-2, rtol=7e-2), f"max abs err {max_err}"
    print("KERNEL_OK")
</pallas_src>

<mosaic_0001>
module attributes {stable_mosaic.version = 11 : i64} {
  func.func @_conv_stats_kernel(%arg0: i32, %arg1: memref<32x128xbf16, #tpu.memory_space<vmem>>, %arg2: memref<128x128xbf16, #tpu.memory_space<vmem>>, %arg3: memref<32x128xf32, #tpu.memory_space<vmem>>, %arg4: memref<1x2x128xf32, #tpu.memory_space<vmem>>) attributes {dimension_semantics = [#tpu.dimension_semantics<parallel>], iteration_bounds = array<i64: 1>, scalar_prefetch = 0 : i64, scratch_operands = 0 : i64, tpu.core_type = #tpu.core_type<tc>, window_params = [{transform_indices = @transform_0, window_bounds = array<i64: 32, 128>}, {pipeline_mode = #tpu.pipeline_mode<synchronous>, transform_indices = @transform_1, window_bounds = array<i64: 128, 128>}, {transform_indices = @transform_2, window_bounds = array<i64: 32, 128>}, {transform_indices = @transform_3, window_bounds = array<i64: 1, 2, 128>}]} {
    %c0 = arith.constant 0 : index
    %c0_0 = arith.constant 0 : index
    %0 = vector.load %arg1[%c0, %c0_0] : memref<32x128xbf16, #tpu.memory_space<vmem>>, vector<32x128xbf16>
    %1 = arith.extf %0 : vector<32x128xbf16> to vector<32x128xf32>
    %2 = arith.mulf %1, %1 : vector<32x128xf32>
    %3 = arith.mulf %2, %1 : vector<32x128xf32>
    %cst = arith.constant 5.000000e-01 : f32
    %4 = vector.broadcast %cst : f32 to vector<32x128xf32>
    %5 = arith.mulf %4, %1 : vector<32x128xf32>
    %cst_1 = arith.constant 4.471500e-02 : f32
    %6 = vector.broadcast %cst_1 : f32 to vector<32x128xf32>
    %7 = arith.mulf %6, %3 : vector<32x128xf32>
    %8 = arith.addf %1, %7 : vector<32x128xf32>
    %cst_2 = arith.constant 0.797884583 : f32
    %9 = vector.broadcast %cst_2 : f32 to vector<32x128xf32>
    %10 = arith.mulf %9, %8 : vector<32x128xf32>
    %11 = math.tanh %10 : vector<32x128xf32>
    %cst_3 = arith.constant 1.000000e+00 : f32
    %12 = vector.broadcast %cst_3 : f32 to vector<32x128xf32>
    %13 = arith.addf %12, %11 : vector<32x128xf32>
    %14 = arith.mulf %5, %13 : vector<32x128xf32>
    %15 = arith.truncf %14 : vector<32x128xf32> to vector<32x128xbf16>
    %c0_4 = arith.constant 0 : index
    %c0_5 = arith.constant 0 : index
    %16 = vector.load %arg2[%c0_4, %c0_5] : memref<128x128xbf16, #tpu.memory_space<vmem>>, vector<128x128xbf16>
    %cst_6 = arith.constant dense<0.000000e+00> : vector<32x128xf32>
    %17 = tpu.matmul %15, %16, %cst_6 {dimension_numbers = #tpu.dot_dimension_numbers<[1], [0], [0], [1], [0, 0, 1, 1], [], []>} : vector<32x128xbf16>, vector<128x128xbf16>, vector<32x128xf32> -> vector<32x128xf32>
    %c0_7 = arith.constant 0 : index
    %c0_8 = arith.constant 0 : index
    %18 = vector.load %arg3[%c0_7, %c0_8] : memref<32x128xf32, #tpu.memory_space<vmem>>, vector<32x128xf32>
    tpu.vector_store %arg3[%c0_7, %c0_8], %17 {strides = array<i32>} : memref<32x128xf32, #tpu.memory_space<vmem>>, vector<32x128xf32>,
    %cst_9 = arith.constant dense<0.000000e+00> : vector<128xf32>
    %19 = vector.multi_reduction <add>, %17, %cst_9 [0] : vector<32x128xf32> to vector<128xf32>
    %20 = vector.shape_cast %19 : vector<128xf32> to vector<1x128xf32>
    %c0_10 = arith.constant 0 : index
    %c0_11 = arith.constant 0 : index
    %c0_12 = arith.constant 0 : index
    %21 = vector.load %arg4[%c0_10, %c0_11, %c0_12] : memref<1x2x128xf32, #tpu.memory_space<vmem>>, vector<1x1x128xf32>
    %22 = vector.shape_cast %21 : vector<1x1x128xf32> to vector<1x128xf32>
    %23 = vector.shape_cast %20 : vector<1x128xf32> to vector<1x1x128xf32>
    tpu.vector_store %arg4[%c0_10, %c0_11, %c0_12], %23 {strides = array<i32>} : memref<1x2x128xf32, #tpu.memory_space<vmem>>, vector<1x1x128xf32>,
    %24 = arith.mulf %17, %17 : vector<32x128xf32>
    %cst_13 = arith.constant dense<0.000000e+00> : vector<128xf32>
    %25 = vector.multi_reduction <add>, %24, %cst_13 [0] : vector<32x128xf32> to vector<128xf32>
    %26 = vector.shape_cast %25 : vector<128xf32> to vector<1x128xf32>
    %c0_14 = arith.constant 0 : index
    %c1 = arith.constant 1 : index
    %c0_15 = arith.constant 0 : index
    %27 = vector.load %arg4[%c0_14, %c1, %c0_15] : memref<1x2x128xf32, #tpu.memory_space<vmem>>, vector<1x1x128xf32>
    %28 = vector.shape_cast %27 : vector<1x1x128xf32> to vector<1x128xf32>
    %29 = vector.shape_cast %26 : vector<1x128xf32> to vector<1x1x128xf32>
    tpu.vector_store %arg4[%c0_14, %c1, %c0_15], %29 {strides = array<i32>} : memref<1x2x128xf32, #tpu.memory_space<vmem>>, vector<1x1x128xf32>,
    return
  }
  func.func @transform_0(%arg0: i32) -> (i32, i32) {
    %c0_i32 = arith.constant 0 : i32
    %c0_i32_0 = arith.constant 0 : i32
    return %arg0, %c0_i32 : i32, i32
  }
  func.func @transform_1(%arg0: i32) -> (i32, i32) {
    %c0_i32 = arith.constant 0 : i32
    %c0_i32_0 = arith.constant 0 : i32
    %c0_i32_1 = arith.constant 0 : i32
    return %c0_i32, %c0_i32_0 : i32, i32
  }
  func.func @transform_2(%arg0: i32) -> (i32, i32) {
    %c0_i32 = arith.constant 0 : i32
    %c0_i32_0 = arith.constant 0 : i32
    return %arg0, %c0_i32 : i32, i32
  }
  func.func @transform_3(%arg0: i32) -> (i32, i32, i32) {
    %c0_i32 = arith.constant 0 : i32
    %c0_i32_0 = arith.constant 0 : i32
    %c0_i32_1 = arith.constant 0 : i32
    return %arg0, %c0_i32, %c0_i32_0 : i32, i32, i32
  }
}

</mosaic_0001>

<llo_original>
// kernel: tpu_custom_call.1
$region0: #{tpu_custom_call.1}
  #allocation0 [shape = 'u32[]', space=smem, size = 0x4, offset = 0x4, fixed_abs, tag = 'smem constant byte address 0x4 - core index']
  #allocation1 [shape = 'u32[144,128]{1,0:T(1,128)}', space=vmem, size = 0x12000, scoped, tag = 'internal scratch']
  %s0 = inlined_call_operand.hbm [shape: bf16[32,128], index: 0, kind: input, shape index: {}]
  %s1 = inlined_call_operand.hbm [shape: bf16[128,128], index: 1, kind: input, shape index: {}]
  %s2 = inlined_call_operand.hbm [shape: f32[32,128], index: 2, kind: output, shape index: {0}]
  %s3 = inlined_call_operand.hbm [shape: f32[1,2,128], index: 3, kind: output, shape index: {1}]
  %4 = xla_tuple %s2, %s3
  %s5 = sld [smem:[#allocation0]]
  $region34: #{tpu_custom_call.1} parent=0
    _
  %s7 = ssub.s32 1, %s5
  %s8 = scalar_select 0, %s7, %s5
  $region1: #{tpu_custom_call.1} parent=0
    #allocation2 [shape = 'u8[8192]{0}', space=vmem, size = 0x2000, scoped, tag = 'input window, operand 0, single buffered']
    #allocation3 [shape = 's32[1]{0}', space=sflag, size = 0x4, scoped, tag = 'scoped memory for tpu_custom_call.1']
    #allocation4 [shape = 's32[1]{0}', space=sflag, size = 0x4, scoped, tag = 'scoped memory for tpu_custom_call.1']
    #allocation5 [shape = 'u8[32768]{0}', space=vmem, size = 0x8000, scoped, tag = 'input window, operand 1, single buffered']
    #allocation6 [shape = 's32[1]{0}', space=sflag, size = 0x4, scoped, tag = 'scoped memory for tpu_custom_call.1']
    #allocation7 [shape = 'u8[16384]{0}', space=vmem, size = 0x4000, scoped, tag = 'output window, operand 0, single buffered']
    #allocation8 [shape = 'u8[1024]{0}', space=vmem, size = 0x400, scoped, tag = 'output window, operand 1, single buffered']
    #allocation9 [shape = 's32[1]{0}', space=sflag, size = 0x4, scoped, tag = 'scoped memory for tpu_custom_call.1']
    %9 = vsyncpa [#allocation3], 0
    %10 = vsyncpa [#allocation6], 0
    %11 = vsyncpa [#allocation4], 0
    %12 = vsyncpa [#allocation9], 0
    // Predicated region
    $region2: #{tpu_custom_call.1} parent=1 // pred_check
      _
    $region3: #{tpu_custom_call.1} parent=1 // pred_check_branch
      %14 = sbr.rel (0) target = $region5
    $region4: #{tpu_custom_call.1} parent=1 // pred_region
      %s16 = ssub.s32 256, 256
      %17 = vsyncadd [#allocation3], %s16
      %s18 = sshll.u32 [#allocation2], 4
      %s19 = int_to_ptr.vmem [resolvable:$true] %s18
      %24 = dma.hbm_to_vmem [thread:$0]  %s0, 256, %s19, [#allocation3], 64, 64, 4
    $region5: #{tpu_custom_call.1} parent=1 // pred_fallthru
      _
    // Predicated region
    $region6: #{tpu_custom_call.1} parent=1 // pred_check
      _
    $region7: #{tpu_custom_call.1} parent=1 // pred_check_branch
      %26 = sbr.rel (0) target = $region9
    $region8: #{tpu_custom_call.1} parent=1 // pred_region
      %s28 = ssub.s32 1024, 1024
      %29 = vsyncadd [#allocation6], %s28
      %s30 = sshll.u32 [#allocation5], 4
      %s31 = int_to_ptr.vmem [resolvable:$true] %s30
      %36 = dma.hbm_to_vmem [thread:$0]  %s1, 1024, %s31, [#allocation6], 64, 64, 4
    $region9: #{tpu_custom_call.1} parent=1 // pred_fallthru
      _
    // Predicated region
    $region10: #{tpu_custom_call.1} parent=1 // pred_check
      _
    $region11: #{tpu_custom_call.1} parent=1 // pred_check_branch
      %38 = sbr.rel (0) target = $region13
    $region12: #{tpu_custom_call.1} parent=1 // pred_region
      %39 = dma.done [#allocation3], 256
    $region13: #{tpu_custom_call.1} parent=1 // pred_fallthru
      _
    // Predicated region
    $region14: #{tpu_custom_call.1} parent=1 // pred_check
      _
    $region15: #{tpu_custom_call.1} parent=1 // pred_check_branch
      %41 = sbr.rel (0) target = $region17
    $region16: #{tpu_custom_call.1} parent=1 // pred_region
      %42 = dma.done [#allocation6], 1024
    $region17: #{tpu_custom_call.1} parent=1 // pred_fallthru
      _
    %v44 = vld [vmem:[#allocation2] sm:$0xf]
    %v45 = vld [vmem:[#allocation2 + $0x4] sm:$0xf]
    %v46 = vld [vmem:[#allocation2 + $0x8] sm:$0xf]
    %v47 = vld [vmem:[#allocation2 + $0xc] sm:$0xf]
    %v48 = vunpack.c.l.bf16 %v44
    %v49 = vunpack.c.l.bf16 %v45
    %v50 = vunpack.c.l.bf16 %v46
    %v51 = vunpack.c.l.bf16 %v47
    %v52 = vmul.f32 %v48, %v48
    %v53 = vmul.f32 %v49, %v49
    %v54 = vmul.f32 %v50, %v50
    %v55 = vmul.f32 %v51, %v51
    %v56 = vmul.f32 %v52, %v48
    %v57 = vmul.f32 %v53, %v49
    %v58 = vmul.f32 %v54, %v50
    %v59 = vmul.f32 %v55, %v51
    %v60 = vmul.f32 %v48, 0.5
    %v61 = vmul.f32 %v49, 0.5
    %v62 = vmul.f32 %v50, 0.5
    %v63 = vmul.f32 %v51, 0.5
    %v64 = vmul.f32 %v56, 0.044715
    %v65 = vmul.f32 %v57, 0.044715
    %v66 = vmul.f32 %v58, 0.044715
    %v67 = vmul.f32 %v59, 0.044715
    %v68 = vadd.f32 %v48, %v64
    %v69 = vadd.f32 %v49, %v65
    %v70 = vadd.f32 %v50, %v66
    %v71 = vadd.f32 %v51, %v67
    %v72 = vmul.f32 %v68, 0.7978846
    %v73 = vmul.f32 %v69, 0.7978846
    %v74 = vmul.f32 %v70, 0.7978846
    %v75 = vmul.f32 %v71, 0.7978846
    %v76 = vtanh.pop %v72
    %v77 = vtanh.pop %v73
    %v78 = vtanh.pop %v74
    %v79 = vtanh.pop %v75
    %v80 = vadd.f32 %v76, 1.0
    %v81 = vadd.f32 %v77, 1.0
    %v82 = vadd.f32 %v78, 1.0
    %v83 = vadd.f32 %v79, 1.0
    %v84 = vmul.f32 %v60, %v80
    %v85 = vmul.f32 %v61, %v81
    %v86 = vmul.f32 %v62, %v82
    %v87 = vmul.f32 %v63, %v83
    %v88 = vpack.c.bf16 %v85, %v84
    %v89 = vpack.c.bf16 %v87, %v86
    %v90 = vld [vmem:[#allocation5] sm:$0xf]
    %v91 = vld [vmem:[#allocation5 + $0x4] sm:$0xf]
    %v92 = vld [vmem:[#allocation5 + $0x8] sm:$0xf]
    %v93 = vld [vmem:[#allocation5 + $0xc] sm:$0xf]
    %v94 = vld [vmem:[#allocation5 + $0x10] sm:$0xf]
    %v95 = vld [vmem:[#allocation5 + $0x14] sm:$0xf]
    %v96 = vld [vmem:[#allocation5 + $0x18] sm:$0xf]
    %v97 = vld [vmem:[#allocation5 + $0x1c] sm:$0xf]
    %v98 = vld [vmem:[#allocation5 + $0x20] sm:$0xf]
    %v99 = vld [vmem:[#allocation5 + $0x24] sm:$0xf]
    %v100 = vld [vmem:[#allocation5 + $0x28] sm:$0xf]
    %v101 = vld [vmem:[#allocation5 + $0x2c] sm:$0xf]
    %v102 = vld [vmem:[#allocation5 + $0x30] sm:$0xf]
    %v103 = vld [vmem:[#allocation5 + $0x34] sm:$0xf]
    %v104 = vld [vmem:[#allocation5 + $0x38] sm:$0xf]
    %v105 = vld [vmem:[#allocation5 + $0x3c] sm:$0xf]
    %v122 = vunpack.c.l.b16 %v90
    %v123 = vunpack.c.l.b16 %v91
    %v124 = vunpack.c.l.b16 %v92
    %v125 = vunpack.c.l.b16 %v93
    %v126 = vunpack.c.l.b16 %v94
    %v127 = vunpack.c.l.b16 %v95
    %v128 = vunpack.c.l.b16 %v96
    %v129 = vunpack.c.l.b16 %v97
    %v130 = vunpack.c.l.b16 %v98
    %v131 = vunpack.c.l.b16 %v99
    %v132 = vunpack.c.l.b16 %v100
    %v133 = vunpack.c.l.b16 %v101
    %v134 = vunpack.c.l.b16 %v102
    %v135 = vunpack.c.l.b16 %v103
    %v136 = vunpack.c.l.b16 %v104
    %v137 = vunpack.c.l.b16 %v105
    %v138 = vpack.c.b16 %v123, %v122
    %v139 = vpack.c.b16 %v125, %v124
    %v140 = vpack.c.b16 %v127, %v126
    %v141 = vpack.c.b16 %v129, %v128
    %v142 = vpack.c.b16 %v131, %v130
    %v143 = vpack.c.b16 %v133, %v132
    %v144 = vpack.c.b16 %v135, %v134
    %v145 = vpack.c.b16 %v137, %v136
    %154 = vmatprep.subr.bf16.mxu0 0
    %155 = vmatpush1.bf16.msra.mxu0 %v145
    %156 = vmatprep.subr.bf16.mxu0 0
    %157 = vmatpush1.bf16.msra.mxu0 %v144
    %158 = vmatprep.subr.bf16.mxu0 0
    %159 = vmatpush1.bf16.msra.mxu0 %v143
    %160 = vmatprep.subr.bf16.mxu0 0
    %161 = vmatpush1.bf16.msra.mxu0 %v142
    %162 = vmatprep.subr.bf16.mxu0 0
    %163 = vmatpush1.bf16.msra.mxu0 %v141
    %164 = vmatprep.subr.bf16.mxu0 0
    %165 = vmatpush1.bf16.msra.mxu0 %v140
    %166 = vmatprep.subr.bf16.mxu0 0
    %167 = vmatpush1.bf16.msra.mxu0 %v139
    %168 = vmatprep.subr.bf16.mxu0 0
    %169 = vmatpush1.bf16.msra.mxu0 %v138
    %170 = vmatprep.subr.bf16.mxu0 0
    %171 = vmatpush2.bf16.msra.mxu0 0
    %172 = vmatprep.subr.bf16.mxu0 0
    %173 = vmatpush2.bf16.msra.mxu0 0
    %174 = vmatprep.subr.bf16.mxu0 0
    %175 = vmatpush2.bf16.msra.mxu0 0
    %176 = vmatprep.subr.bf16.mxu0 0
    %177 = vmatpush2.bf16.msra.mxu0 0
    %178 = vmatprep.subr.bf16.mxu0 0
    %179 = vmatpush2.bf16.msra.mxu0 0
    %180 = vmatprep.subr.bf16.mxu0 0
    %181 = vmatpush2.bf16.msra.mxu0 0
    %182 = vmatprep.subr.bf16.mxu0 0
    %183 = vmatpush2.bf16.msra.mxu0 0
    %184 = vmatprep.subr.bf16.mxu0 0
    %185 = vmatpush2.bf16.msra.mxu0 0
    %186 = vmatprep.mubr.bf16.mxu0 0
    %187 = vmatmul.mubr.bf16.gmra.mxu0 %v88
    %v188 = vpop.f32.mrf.mxu0
    %v189 = vadd.f32 0.0, %v188
    %v190 = vpop.f32.mrf.mxu0
    %v191 = vpop.f32.mrf.mxu0
    %v192 = vadd.f32 0.0, %v191
    %v193 = vpop.f32.mrf.mxu0
    %194 = vmatprep.mubr.bf16.mxu0 0
    %195 = vmatmul.mubr.bf16.gmra.mxu0 %v89
    %v196 = vpop.f32.mrf.mxu0
    %v197 = vadd.f32 0.0, %v196
    %v198 = vpop.f32.mrf.mxu0
    %v199 = vpop.f32.mrf.mxu0
    %v200 = vadd.f32 0.0, %v199
    %v201 = vpop.f32.mrf.mxu0
    %202 = vdwg.mxu0
    %203 = vst [vmem:[#allocation7] sm:$0xff] %v189
    %204 = vst [vmem:[#allocation7 + $0x8] sm:$0xff] %v192
    %205 = vst [vmem:[#allocation7 + $0x10] sm:$0xff] %v197
    %206 = vst [vmem:[#allocation7 + $0x18] sm:$0xff] %v200
    %v207 = vadd.f32 %v189, %v192
    %v208 = vadd.f32 %v207, %v197
    %v209 = vadd.f32 %v208, %v200
    %v210 = vrot.slane %v209, 4
    %v211 = vadd.f32 %v209, %v210
    %v212 = vrot.slane %v211, 2
    %v213 = vadd.f32 %v211, %v212
    %v214 = vrot.slane %v213, 1
    %v215 = vadd.f32 %v213, %v214
    %216 = vst [vmem:[#allocation8] sm:$0x1] %v215
    %v217 = vmul.f32 %v189, %v189
    %v218 = vmul.f32 %v192, %v192
    %v219 = vmul.f32 %v197, %v197
    %v220 = vmul.f32 %v200, %v200
    %v221 = vadd.f32 %v217, %v218
    %v222 = vadd.f32 %v221, %v219
    %v223 = vadd.f32 %v222, %v220
    %v224 = vrot.slane %v223, 4
    %v225 = vadd.f32 %v223, %v224
    %v226 = vrot.slane %v225, 2
    %v227 = vadd.f32 %v225, %v226
    %v228 = vrot.slane %v227, 1
    %v229 = vadd.f32 %v227, %v228
    %230 = vst [vmem:[#allocation8 + $0x1] sm:$0x1] %v229
    // Predicated region
    $region18: #{tpu_custom_call.1} parent=1 // pred_check
      _
    $region19: #{tpu_custom_call.1} parent=1 // pred_check_branch
      %232 = sbr.rel (0) target = $region21
    $region20: #{tpu_custom_call.1} parent=1 // pred_region
      %s234 = ssub.s32 512, 512
      %235 = vsyncadd [#allocation4], %s234
      %s236 = sshll.u32 [#allocation7], 4
      %s237 = int_to_ptr.vmem [resolvable:$true] %s236
      %242 = dma.vmem_to_hbm [thread:$0]  %s237, 512, %s2, [#allocation4], 128, 128, 8
    $region21: #{tpu_custom_call.1} parent=1 // pred_fallthru
      _
    // Predicated region
    $region22: #{tpu_custom_call.1} parent=1 // pred_check
      _
    $region23: #{tpu_custom_call.1} parent=1 // pred_check_branch
      %244 = sbr.rel (0) target = $region25
    $region24: #{tpu_custom_call.1} parent=1 // pred_region
      %s246 = ssub.s32 32, 32
      %247 = vsyncadd [#allocation9], %s246
      %s249 = sshll.u32 [#allocation8], 4
      %s250 = int_to_ptr.vmem [resolvable:$true] %s249
      %252 = dma.vmem_to_hbm [thread:$0]  %s250, 32, %s3, [#allocation9]
    $region25: #{tpu_custom_call.1} parent=1 // pred_fallthru
      _
    // Predicated region
    $region26: #{tpu_custom_call.1} parent=1 // pred_check
      _
    $region27: #{tpu_custom_call.1} parent=1 // pred_check_branch
      %254 = sbr.rel (0) target = $region29
    $region28: #{tpu_custom_call.1} parent=1 // pred_region
      %255 = dma.done [#allocation4], 512
    $region29: #{tpu_custom_call.1} parent=1 // pred_fallthru
      _
    // Predicated region
    $region30: #{tpu_custom_call.1} parent=1 // pred_check
      _
    $region31: #{tpu_custom_call.1} parent=1 // pred_check_branch
      %257 = sbr.rel (0) target = $region33
    $region32: #{tpu_custom_call.1} parent=1 // pred_region
      %258 = dma.done [#allocation9], 32
    $region33: #{tpu_custom_call.1} parent=1 // pred_fallthru
      _
    %259 = vsyncpa [#allocation3], 1
    %260 = vsyncpa [#allocation6], 1
    %261 = vsyncpa [#allocation4], 1
    %262 = vsyncpa [#allocation9], 1

</llo_original>
